<compile_context>
chip_gen: v6e
topology: v6e:2x2x1
jax: 0.10.0
libtpu: 0.0.40
codegen_flags: <defaults>
</compile_context>

<pallas_src>
import math

import jax
import jax.numpy as jnp
from jax.experimental import pallas as pl
from jax.experimental.pallas import tpu as pltpu


def _make_kernel(has_mask, return_attn, compute_dtype):
    """Build the attention kernel body for the requested operand set."""

    def kernel(*refs):
        q_ref, k_ref, v_ref = refs[0], refs[1], refs[2]
        i = 3
        m_ref = None
        if has_mask:
            m_ref = refs[i]
            i += 1
        wqt_ref, bq_ref, wkt_ref, bk_ref, wvt_ref, bv_ref = refs[i:i + 6]
        out_ref = refs[i + 6]
        attn_ref = refs[i + 7] if return_attn else None

        Bb, S, D = q_ref.shape
        cdt = compute_dtype
        inv_sqrt_d = jnp.float32(1.0 / math.sqrt(D))

        # One (Bb*S, D) @ (D, D) matmul per projection (weights arrive
        # pre-transposed, so this is plain x @ Wt + b).  The 1/sqrt(d) scale is
        # folded into the Q projection (cheaper than scaling (S,S) scores).
        q2 = q_ref[...].reshape(Bb * S, D).astype(cdt)
        k2 = k_ref[...].reshape(Bb * S, D).astype(cdt)
        v2 = v_ref[...].reshape(Bb * S, D).astype(cdt)

        qp = (jnp.dot(q2, wqt_ref[...], preferred_element_type=jnp.float32)
              + bq_ref[...]) * inv_sqrt_d
        kp = jnp.dot(k2, wkt_ref[...], preferred_element_type=jnp.float32) + bk_ref[...]
        vp = jnp.dot(v2, wvt_ref[...], preferred_element_type=jnp.float32) + bv_ref[...]

        qp = qp.reshape(Bb, S, D)
        kp = kp.reshape(Bb, S, D)
        vp = vp.reshape(Bb, S, D)

        # Batched Q @ K^T contracting the last dims -- no kp transpose copy.
        scores = jnp.einsum("bqd,bkd->bqk", qp.astype(cdt), kp.astype(cdt),
                            preferred_element_type=jnp.float32)
        if m_ref is not None:
            # mask block is (1,S,S) (shared) or (Bb,S,S); broadcasts over batch.
            scores = jnp.where(m_ref[...] == 0, jnp.float32(-1e9), scores)

        # Numerically stable softmax, all f32, EXACT normalization.
        s_max = jnp.max(scores, axis=-1, keepdims=True)
        # Clamp so masked entries (~-1e9) never reach the EUP exp with a
        # huge-magnitude argument; exp(-60) ~ 1e-26 ~ 0 at f32.
        e = jnp.exp(jnp.maximum(scores - s_max, jnp.float32(-60.0)))
        attn = e / jnp.sum(e, axis=-1, keepdims=True)

        out = jnp.einsum("bqk,bkd->bqd", attn.astype(cdt), vp.astype(cdt),
                         preferred_element_type=jnp.float32)

        out_ref[...] = out.astype(out_ref.dtype)
        if attn_ref is not None:
            attn_ref[...] = attn.astype(attn_ref.dtype)

    return kernel


def _vmem_capacity_bytes():
    """Physical VMEM of the local chip; conservative fallback when unknown."""
    try:
        return int(pltpu.get_tpu_info().vmem_capacity_bytes)
    except Exception:
        return 64 * 1024 * 1024   # v7x physical VMEM per TensorCore


def _min_grid_blocks():
    """Keep >= 2 grid blocks only on dual-TensorCore chips (v7x); on
    single-TC v5e/v6e the grid is a sequential loop so fewer, fatter steps
    are strictly better."""
    try:
        kind = jax.devices()[0].device_kind.lower()
        if "v7" in kind:
            return 2
    except Exception:
        pass
    return 1


def _pick_batch_block(B, S, D, in_itemsize, return_attn, mask_mode,
                      vmem_budget, min_blocks):
    """Largest divisor of B whose per-step VMEM footprint fits the budget.

    mask_mode: 0 = no mask, 1 = shared (1,S,S) mask, 2 = per-batch mask.
    """
    weights = 2 * (3 * D * D * in_itemsize + 3 * D * 4)   # double-buffered

    def fits(bb):
        tiles = 3 * bb * S * D * in_itemsize          # Q, K, V input blocks
        tiles += bb * S * D * 4                       # output block
        if return_attn:
            tiles += bb * S * S * 4                   # attn-weights block
        if mask_mode == 1:
            tiles += S * S * 4
        elif mask_mode == 2:
            tiles += bb * S * S * 4
        # f32 temporaries inside the body (projections + scores/exp/attn).
        temps = 3 * bb * S * D * 4 + 3 * bb * S * S * 4
        return 2 * tiles + weights + temps <= vmem_budget

    best = 1
    for bb in range(1, B + 1):
        if B % bb == 0 and (B // bb) >= min_blocks and fits(bb):
            best = bb
    return best


def single_head_attention(Q, K, V, Wq, bq, Wk, bk, Wv, bv, mask=None, *,
                          return_attn=True, batch_block=None,
                          compute_dtype=jnp.float32):
    """Pallas implementation of SingleHeadAttention.forward.

    Returns (output, attention_weights) when return_attn=True (module
    semantics), otherwise just output (skips the O(S^2) writeback).
    compute_dtype=jnp.bfloat16 halves the Q/K/V/weight DMA and feeds native
    bf16 to the MXU (f32 accumulation, f32 softmax); default f32 is exact.
    """
    B, S, D = Q.shape
    out_dtype = Q.dtype

    # Cast inputs/weights to the compute dtype *in HBM* (halves DMA for bf16).
    Qc = Q.astype(compute_dtype)
    Kc = K.astype(compute_dtype)
    Vc = V.astype(compute_dtype)
    # Pre-transpose weights ONCE, outside the grid loop (nn.Linear: x @ W.T + b).
    WqT = Wq.T.astype(compute_dtype)
    WkT = Wk.T.astype(compute_dtype)
    WvT = Wv.T.astype(compute_dtype)
    # Biases stay f32: added after the f32-accumulated matmuls.
    bq2 = bq.reshape(1, D).astype(jnp.float32)
    bk2 = bk.reshape(1, D).astype(jnp.float32)
    bv2 = bv.reshape(1, D).astype(jnp.float32)

    # Mask: keep it as small as broadcasting allows -- a batch-shared mask is
    # passed as ONE (1,S,S) block with a constant index_map (never a (B,S,S)
    # HBM copy); genuinely per-batch masks get per-block slices.
    mask3 = None
    mask_mode = 0
    if mask is not None:
        m = jnp.asarray(mask).astype(jnp.float32)
        assert m.ndim <= 3, "mask must be broadcastable to (B, S, S)"
        tgt = jnp.broadcast_shapes(m.shape, (1, S, S))
        assert tgt[-2:] == (S, S) and tgt[0] in (1, B), \
            "mask must be broadcastable to (B, S, S)"
        mask3 = jnp.broadcast_to(m, tgt)
        mask_mode = 1 if tgt[0] == 1 else 2

    vmem_budget = int(_vmem_capacity_bytes() * 0.75)   # headroom below physical
    in_itemsize = jnp.dtype(compute_dtype).itemsize

    bb = batch_block if batch_block is not None else _pick_batch_block(
        B, S, D, in_itemsize, return_attn, mask_mode, vmem_budget,
        _min_grid_blocks())
    assert B % bb == 0, "batch_block must divide batch size"
    n_blocks = B // bb

    per_batch_D = pl.BlockSpec((bb, S, D), lambda i: (i, 0, 0))
    per_batch_S = pl.BlockSpec((bb, S, S), lambda i: (i, 0, 0))
    whole_w = pl.BlockSpec((D, D), lambda i: (0, 0))      # constant index_map
    whole_b = pl.BlockSpec((1, D), lambda i: (0, 0))

    in_specs = [per_batch_D, per_batch_D, per_batch_D]
    args = [Qc, Kc, Vc]
    if mask3 is not None:
        if mask_mode == 1:
            in_specs.append(pl.BlockSpec((1, S, S), lambda i: (0, 0, 0)))
        else:
            in_specs.append(per_batch_S)
        args.append(mask3)
    in_specs += [whole_w, whole_b, whole_w, whole_b, whole_w, whole_b]
    args += [WqT, bq2, WkT, bk2, WvT, bv2]

    if return_attn:
        out_shape = (jax.ShapeDtypeStruct((B, S, D), out_dtype),
                     jax.ShapeDtypeStruct((B, S, S), jnp.float32))
        out_specs = [per_batch_D, per_batch_S]
    else:
        out_shape = jax.ShapeDtypeStruct((B, S, D), out_dtype)
        out_specs = per_batch_D

    kernel = _make_kernel(mask3 is not None, return_attn, compute_dtype)

    return pl.pallas_call(
        kernel,
        out_shape=out_shape,
        grid=(n_blocks,),
        in_specs=in_specs,
        out_specs=out_specs,
        compiler_params=pltpu.CompilerParams(
            dimension_semantics=("parallel",),   # batch blocks across v7x TCs
            vmem_limit_bytes=min(vmem_budget, 100 * 1024 * 1024),
        ),
    )(*args)


def _reference(Q, K, V, Wq, bq, Wk, bk, Wv, bv, mask=None):
    """Pure-JAX reference mirroring the PyTorch module."""
    d_model = Q.shape[-1]
    Qp = Q @ Wq.T + bq
    Kp = K @ Wk.T + bk
    Vp = V @ Wv.T + bv
    scores = jnp.einsum("bqd,bkd->bqk", Qp, Kp) / math.sqrt(d_model)
    if mask is not None:
        scores = jnp.where(mask == 0, -1e9, scores)
    attn = jax.nn.softmax(scores, axis=-1)
    out = jnp.einsum("bqk,bkd->bqd", attn, Vp)
    return out, attn


if __name__ == "__main__":
    B, S, D = 2, 8, 32   # batch, sequence length, d_model

    key = jax.random.PRNGKey(0)
    keys = jax.random.split(key, 9)

    # Deterministic parameter init, mimicking nn.Linear's U(-1/sqrt(d), 1/sqrt(d)).
    bound = 1.0 / math.sqrt(D)
    Wq = jax.random.uniform(keys[0], (D, D), jnp.float32, -bound, bound)
    bq = jax.random.uniform(keys[1], (D,), jnp.float32, -bound, bound)
    Wk = jax.random.uniform(keys[2], (D, D), jnp.float32, -bound, bound)
    bk = jax.random.uniform(keys[3], (D,), jnp.float32, -bound, bound)
    Wv = jax.random.uniform(keys[4], (D, D), jnp.float32, -bound, bound)
    bv = jax.random.uniform(keys[5], (D,), jnp.float32, -bound, bound)

    Q = jax.random.normal(keys[6], (B, S, D), jnp.float32)
    K = jax.random.normal(keys[7], (B, S, D), jnp.float32)
    V = jax.random.normal(keys[8], (B, S, D), jnp.float32)

    TOL = dict(atol=1e-3, rtol=1e-3)

    # --- mask=None path (kernel variant with no mask operand / no mask DMA) ---
    out, attn = single_head_attention(Q, K, V, Wq, bq, Wk, bk, Wv, bv, mask=None)
    out = jax.block_until_ready(out)
    attn = jax.block_until_ready(attn)
    out_ref, attn_ref = _reference(Q, K, V, Wq, bq, Wk, bk, Wv, bv, mask=None)
    assert jnp.allclose(out, out_ref, **TOL), "output mismatch (no mask)"
    assert jnp.allclose(attn, attn_ref, **TOL), "attn mismatch (no mask)"

    # --- causal-mask path (shared (1,S,S) mask block) ---
    causal = jnp.tril(jnp.ones((S, S), jnp.float32))
    out_m, attn_m = single_head_attention(Q, K, V, Wq, bq, Wk, bk, Wv, bv,
                                          mask=causal)
    out_m = jax.block_until_ready(out_m)
    attn_m = jax.block_until_ready(attn_m)
    out_mr, attn_mr = _reference(Q, K, V, Wq, bq, Wk, bk, Wv, bv, mask=causal)
    assert jnp.allclose(out_m, out_mr, **TOL), "output mismatch (causal mask)"
    assert jnp.allclose(attn_m, attn_mr, **TOL), "attn mismatch (causal mask)"

    # --- output-only fast path (no (B,S,S) attention-weights writeback) ---
    out_only = single_head_attention(Q, K, V, Wq, bq, Wk, bk, Wv, bv,
                                     mask=causal, return_attn=False)
    out_only = jax.block_until_ready(out_only)
    assert jnp.allclose(out_only, out_mr, **TOL), "output mismatch (no-attn path)"

    print("KERNEL_OK")
</pallas_src>

<mosaic_0001>
module attributes {stable_mosaic.version = 11 : i64} {
  func.func @kernel(%arg0: i32, %arg1: memref<2x8x32xf32, #tpu.memory_space<vmem>>, %arg2: memref<2x8x32xf32, #tpu.memory_space<vmem>>, %arg3: memref<2x8x32xf32, #tpu.memory_space<vmem>>, %arg4: memref<32x32xf32, #tpu.memory_space<vmem>>, %arg5: memref<1x32xf32, #tpu.memory_space<vmem>>, %arg6: memref<32x32xf32, #tpu.memory_space<vmem>>, %arg7: memref<1x32xf32, #tpu.memory_space<vmem>>, %arg8: memref<32x32xf32, #tpu.memory_space<vmem>>, %arg9: memref<1x32xf32, #tpu.memory_space<vmem>>, %arg10: memref<2x8x32xf32, #tpu.memory_space<vmem>>, %arg11: memref<2x8x8xf32, #tpu.memory_space<vmem>>) attributes {dimension_semantics = [#tpu.dimension_semantics<parallel>], iteration_bounds = array<i64: 1>, scalar_prefetch = 0 : i64, scratch_operands = 0 : i64, tpu.core_type = #tpu.core_type<tc>, window_params = [{transform_indices = @transform_0, window_bounds = array<i64: 2, 8, 32>}, {transform_indices = @transform_1, window_bounds = array<i64: 2, 8, 32>}, {transform_indices = @transform_2, window_bounds = array<i64: 2, 8, 32>}, {pipeline_mode = #tpu.pipeline_mode<synchronous>, transform_indices = @transform_3, window_bounds = array<i64: 32, 32>}, {pipeline_mode = #tpu.pipeline_mode<synchronous>, transform_indices = @transform_4, window_bounds = array<i64: 1, 32>}, {pipeline_mode = #tpu.pipeline_mode<synchronous>, transform_indices = @transform_5, window_bounds = array<i64: 32, 32>}, {pipeline_mode = #tpu.pipeline_mode<synchronous>, transform_indices = @transform_6, window_bounds = array<i64: 1, 32>}, {pipeline_mode = #tpu.pipeline_mode<synchronous>, transform_indices = @transform_7, window_bounds = array<i64: 32, 32>}, {pipeline_mode = #tpu.pipeline_mode<synchronous>, transform_indices = @transform_8, window_bounds = array<i64: 1, 32>}, {transform_indices = @transform_9, window_bounds = array<i64: 2, 8, 32>}, {transform_indices = @transform_10, window_bounds = array<i64: 2, 8, 8>}]} {
    %c0 = arith.constant 0 : index
    %c0_0 = arith.constant 0 : index
    %c0_1 = arith.constant 0 : index
    %0 = vector.load %arg1[%c0, %c0_0, %c0_1] : memref<2x8x32xf32, #tpu.memory_space<vmem>>, vector<2x8x32xf32>
    %1 = vector.shape_cast %0 : vector<2x8x32xf32> to vector<16x32xf32>
    %c0_2 = arith.constant 0 : index
    %c0_3 = arith.constant 0 : index
    %c0_4 = arith.constant 0 : index
    %2 = vector.load %arg2[%c0_2, %c0_3, %c0_4] : memref<2x8x32xf32, #tpu.memory_space<vmem>>, vector<2x8x32xf32>
    %3 = vector.shape_cast %2 : vector<2x8x32xf32> to vector<16x32xf32>
    %c0_5 = arith.constant 0 : index
    %c0_6 = arith.constant 0 : index
    %c0_7 = arith.constant 0 : index
    %4 = vector.load %arg3[%c0_5, %c0_6, %c0_7] : memref<2x8x32xf32, #tpu.memory_space<vmem>>, vector<2x8x32xf32>
    %5 = vector.shape_cast %4 : vector<2x8x32xf32> to vector<16x32xf32>
    %c0_8 = arith.constant 0 : index
    %c0_9 = arith.constant 0 : index
    %6 = vector.load %arg4[%c0_8, %c0_9] : memref<32x32xf32, #tpu.memory_space<vmem>>, vector<32x32xf32>
    %cst = arith.constant dense<0.000000e+00> : vector<16x32xf32>
    %7 = tpu.matmul %1, %6, %cst {dimension_numbers = #tpu.dot_dimension_numbers<[1], [0], [0], [1], [0, 0, 1, 1], [], []>} : vector<16x32xf32>, vector<32x32xf32>, vector<16x32xf32> -> vector<16x32xf32>
    %c0_10 = arith.constant 0 : index
    %c0_11 = arith.constant 0 : index
    %8 = vector.load %arg5[%c0_10, %c0_11] : memref<1x32xf32, #tpu.memory_space<vmem>>, vector<1x32xf32>
    %9 = vector.broadcast %8 : vector<1x32xf32> to vector<16x32xf32>
    %10 = arith.addf %7, %9 : vector<16x32xf32>
    %cst_12 = arith.constant 0.176776692 : f32
    %11 = vector.broadcast %cst_12 : f32 to vector<16x32xf32>
    %12 = arith.mulf %10, %11 : vector<16x32xf32>
    %c0_13 = arith.constant 0 : index
    %c0_14 = arith.constant 0 : index
    %13 = vector.load %arg6[%c0_13, %c0_14] : memref<32x32xf32, #tpu.memory_space<vmem>>, vector<32x32xf32>
    %cst_15 = arith.constant dense<0.000000e+00> : vector<16x32xf32>
    %14 = tpu.matmul %3, %13, %cst_15 {dimension_numbers = #tpu.dot_dimension_numbers<[1], [0], [0], [1], [0, 0, 1, 1], [], []>} : vector<16x32xf32>, vector<32x32xf32>, vector<16x32xf32> -> vector<16x32xf32>
    %c0_16 = arith.constant 0 : index
    %c0_17 = arith.constant 0 : index
    %15 = vector.load %arg7[%c0_16, %c0_17] : memref<1x32xf32, #tpu.memory_space<vmem>>, vector<1x32xf32>
    %16 = vector.broadcast %15 : vector<1x32xf32> to vector<16x32xf32>
    %17 = arith.addf %14, %16 : vector<16x32xf32>
    %c0_18 = arith.constant 0 : index
    %c0_19 = arith.constant 0 : index
    %18 = vector.load %arg8[%c0_18, %c0_19] : memref<32x32xf32, #tpu.memory_space<vmem>>, vector<32x32xf32>
    %cst_20 = arith.constant dense<0.000000e+00> : vector<16x32xf32>
    %19 = tpu.matmul %5, %18, %cst_20 {dimension_numbers = #tpu.dot_dimension_numbers<[1], [0], [0], [1], [0, 0, 1, 1], [], []>} : vector<16x32xf32>, vector<32x32xf32>, vector<16x32xf32> -> vector<16x32xf32>
    %c0_21 = arith.constant 0 : index
    %c0_22 = arith.constant 0 : index
    %20 = vector.load %arg9[%c0_21, %c0_22] : memref<1x32xf32, #tpu.memory_space<vmem>>, vector<1x32xf32>
    %21 = vector.broadcast %20 : vector<1x32xf32> to vector<16x32xf32>
    %22 = arith.addf %19, %21 : vector<16x32xf32>
    %23 = vector.shape_cast %12 : vector<16x32xf32> to vector<2x8x32xf32>
    %24 = vector.shape_cast %17 : vector<16x32xf32> to vector<2x8x32xf32>
    %25 = vector.shape_cast %22 : vector<16x32xf32> to vector<2x8x32xf32>
    "tpu.trace_start"() <{level = 10 : i32, message = "bqd,bkd->bqk"}> : () -> ()
    %cst_23 = arith.constant dense<0.000000e+00> : vector<2x8x8xf32>
    %26 = tpu.matmul %23, %24, %cst_23 {dimension_numbers = #tpu.dot_dimension_numbers<[2], [2], [1], [1], [0, 0, 0, 1, 1, 1], [0], [0]>} : vector<2x8x32xf32>, vector<2x8x32xf32>, vector<2x8x8xf32> -> vector<2x8x8xf32>
    "tpu.trace_stop"() : () -> ()
    %cst_24 = arith.constant dense<0xFF800000> : vector<2x8xf32>
    %27 = vector.multi_reduction <maximumf>, %26, %cst_24 [2] : vector<2x8x8xf32> to vector<2x8xf32>
    %28 = vector.shape_cast %27 : vector<2x8xf32> to vector<2x8x1xf32>
    %29 = vector.broadcast %28 : vector<2x8x1xf32> to vector<2x8x8xf32>
    %30 = arith.subf %26, %29 : vector<2x8x8xf32>
    %cst_25 = arith.constant -6.000000e+01 : f32
    %31 = vector.broadcast %cst_25 : f32 to vector<2x8x8xf32>
    %32 = arith.maximumf %30, %31 : vector<2x8x8xf32>
    %33 = math.exp %32 : vector<2x8x8xf32>
    %cst_26 = arith.constant dense<0.000000e+00> : vector<2x8xf32>
    %34 = vector.multi_reduction <add>, %33, %cst_26 [2] : vector<2x8x8xf32> to vector<2x8xf32>
    %35 = vector.shape_cast %34 : vector<2x8xf32> to vector<2x8x1xf32>
    %36 = vector.broadcast %35 : vector<2x8x1xf32> to vector<2x8x8xf32>
    %37 = arith.divf %33, %36 : vector<2x8x8xf32>
    "tpu.trace_start"() <{level = 10 : i32, message = "bqk,bkd->bqd"}> : () -> ()
    %cst_27 = arith.constant dense<0.000000e+00> : vector<2x8x32xf32>
    %38 = tpu.matmul %37, %25, %cst_27 {dimension_numbers = #tpu.dot_dimension_numbers<[2], [1], [1], [2], [0, 0, 0, 1, 1, 2], [0], [0]>} : vector<2x8x8xf32>, vector<2x8x32xf32>, vector<2x8x32xf32> -> vector<2x8x32xf32>
    "tpu.trace_stop"() : () -> ()
    %c0_28 = arith.constant 0 : index
    %c0_29 = arith.constant 0 : index
    %c0_30 = arith.constant 0 : index
    %39 = vector.load %arg10[%c0_28, %c0_29, %c0_30] : memref<2x8x32xf32, #tpu.memory_space<vmem>>, vector<2x8x32xf32>
    tpu.vector_store %arg10[%c0_28, %c0_29, %c0_30], %38 {strides = array<i32>} : memref<2x8x32xf32, #tpu.memory_space<vmem>>, vector<2x8x32xf32>,
    %c0_31 = arith.constant 0 : index
    %c0_32 = arith.constant 0 : index
    %c0_33 = arith.constant 0 : index
    %40 = vector.load %arg11[%c0_31, %c0_32, %c0_33] : memref<2x8x8xf32, #tpu.memory_space<vmem>>, vector<2x8x8xf32>
    tpu.vector_store %arg11[%c0_31, %c0_32, %c0_33], %37 {strides = array<i32>} : memref<2x8x8xf32, #tpu.memory_space<vmem>>, vector<2x8x8xf32>,
    return
  }
  func.func @transform_0(%arg0: i32) -> (i32, i32, i32) {
    %c0_i32 = arith.constant 0 : i32
    %c0_i32_0 = arith.constant 0 : i32
    %c0_i32_1 = arith.constant 0 : i32
    return %arg0, %c0_i32, %c0_i32_0 : i32, i32, i32
  }
  func.func @transform_1(%arg0: i32) -> (i32, i32, i32) {
    %c0_i32 = arith.constant 0 : i32
    %c0_i32_0 = arith.constant 0 : i32
    %c0_i32_1 = arith.constant 0 : i32
    return %arg0, %c0_i32, %c0_i32_0 : i32, i32, i32
  }
  func.func @transform_2(%arg0: i32) -> (i32, i32, i32) {
    %c0_i32 = arith.constant 0 : i32
    %c0_i32_0 = arith.constant 0 : i32
    %c0_i32_1 = arith.constant 0 : i32
    return %arg0, %c0_i32, %c0_i32_0 : i32, i32, i32
  }
  func.func @transform_3(%arg0: i32) -> (i32, i32) {
    %c0_i32 = arith.constant 0 : i32
    %c0_i32_0 = arith.constant 0 : i32
    %c0_i32_1 = arith.constant 0 : i32
    return %c0_i32, %c0_i32_0 : i32, i32
  }
  func.func @transform_4(%arg0: i32) -> (i32, i32) {
    %c0_i32 = arith.constant 0 : i32
    %c0_i32_0 = arith.constant 0 : i32
    %c0_i32_1 = arith.constant 0 : i32
    return %c0_i32, %c0_i32_0 : i32, i32
  }
  func.func @transform_5(%arg0: i32) -> (i32, i32) {
    %c0_i32 = arith.constant 0 : i32
    %c0_i32_0 = arith.constant 0 : i32
    %c0_i32_1 = arith.constant 0 : i32
    return %c0_i32, %c0_i32_0 : i32, i32
  }
  func.func @transform_6(%arg0: i32) -> (i32, i32) {
    %c0_i32 = arith.constant 0 : i32
    %c0_i32_0 = arith.constant 0 : i32
    %c0_i32_1 = arith.constant 0 : i32
    return %c0_i32, %c0_i32_0 : i32, i32
  }
  func.func @transform_7(%arg0: i32) -> (i32, i32) {
    %c0_i32 = arith.constant 0 : i32
    %c0_i32_0 = arith.constant 0 : i32
    %c0_i32_1 = arith.constant 0 : i32
    return %c0_i32, %c0_i32_0 : i32, i32
  }
  func.func @transform_8(%arg0: i32) -> (i32, i32) {
    %c0_i32 = arith.constant 0 : i32
    %c0_i32_0 = arith.constant 0 : i32
    %c0_i32_1 = arith.constant 0 : i32
    return %c0_i32, %c0_i32_0 : i32, i32
  }
  func.func @transform_9(%arg0: i32) -> (i32, i32, i32) {
    %c0_i32 = arith.constant 0 : i32
    %c0_i32_0 = arith.constant 0 : i32
    %c0_i32_1 = arith.constant 0 : i32
    return %arg0, %c0_i32, %c0_i32_0 : i32, i32, i32
  }
  func.func @transform_10(%arg0: i32) -> (i32, i32, i32) {
    %c0_i32 = arith.constant 0 : i32
    %c0_i32_0 = arith.constant 0 : i32
    %c0_i32_1 = arith.constant 0 : i32
    return %arg0, %c0_i32, %c0_i32_0 : i32, i32, i32
  }
}

</mosaic_0001>

<llo_original>
// kernel: tpu_custom_call.1
$region0: #{tpu_custom_call.1}
  #allocation0 [shape = 'u32[]', space=smem, size = 0x4, offset = 0x4, fixed_abs, tag = 'smem constant byte address 0x4 - core index']
  #allocation1 [shape = 'u32[144,128]{1,0:T(1,128)}', space=vmem, size = 0x12000, scoped, tag = 'internal scratch']
  %s0 = inlined_call_operand.hbm [shape: f32[2,8,32], index: 0, kind: input, shape index: {}]
  %s1 = inlined_call_operand.hbm [shape: f32[2,8,32], index: 1, kind: input, shape index: {}]
  %s2 = inlined_call_operand.hbm [shape: f32[2,8,32], index: 2, kind: input, shape index: {}]
  %s3 = inlined_call_operand.hbm [shape: f32[32,32], index: 3, kind: input, shape index: {}]
  %s4 = inlined_call_operand.vmem [shape: f32[1,32], index: 4, kind: input, shape index: {}]
  %s5 = inlined_call_operand.hbm [shape: f32[32,32], index: 5, kind: input, shape index: {}]
  %s6 = inlined_call_operand.vmem [shape: f32[1,32], index: 6, kind: input, shape index: {}]
  %s7 = inlined_call_operand.hbm [shape: f32[32,32], index: 7, kind: input, shape index: {}]
  %s8 = inlined_call_operand.vmem [shape: f32[1,32], index: 8, kind: input, shape index: {}]
  %s9 = inlined_call_operand.hbm [shape: f32[2,8,32], index: 9, kind: output, shape index: {0}]
  %s10 = inlined_call_operand.hbm [shape: f32[2,8,8], index: 10, kind: output, shape index: {1}]
  %11 = xla_tuple %s9, %s10
  %s12 = sld [smem:[#allocation0]]
  $region78: #{tpu_custom_call.1} parent=0
    _
  %s14 = ssub.s32 1, %s12
  %s15 = scalar_select 0, %s14, %s12
  $region1: #{tpu_custom_call.1} parent=0
    #allocation2 [shape = 'u8[8192]{0}', space=vmem, size = 0x2000, scoped, tag = 'input window, operand 0, single buffered']
    #allocation3 [shape = 's32[1]{0}', space=sflag, size = 0x4, scoped, tag = 'scoped memory for tpu_custom_call.1']
    #allocation4 [shape = 's32[1]{0}', space=sflag, size = 0x4, scoped, tag = 'scoped memory for tpu_custom_call.1']
    #allocation5 [shape = 'u8[8192]{0}', space=vmem, size = 0x2000, scoped, tag = 'input window, operand 1, single buffered']
    #allocation6 [shape = 's32[1]{0}', space=sflag, size = 0x4, scoped, tag = 'scoped memory for tpu_custom_call.1']
    #allocation7 [shape = 'u8[8192]{0}', space=vmem, size = 0x2000, scoped, tag = 'input window, operand 2, single buffered']
    #allocation8 [shape = 'u8[16384]{0}', space=vmem, size = 0x4000, scoped, tag = 'input window, operand 3, single buffered']
    #allocation9 [shape = 's32[1]{0}', space=sflag, size = 0x4, scoped, tag = 'scoped memory for tpu_custom_call.1']
    #allocation10 [shape = 'u8[16384]{0}', space=vmem, size = 0x4000, scoped, tag = 'input window, operand 5, single buffered']
    #allocation11 [shape = 'u8[16384]{0}', space=vmem, size = 0x4000, scoped, tag = 'input window, operand 7, single buffered']
    #allocation12 [shape = 's32[1]{0}', space=sflag, size = 0x4, scoped, tag = 'scoped memory for tpu_custom_call.1']
    #allocation13 [shape = 'u8[8192]{0}', space=vmem, size = 0x2000, scoped, tag = 'output window, operand 0, single buffered']
    #allocation14 [shape = 'u8[8192]{0}', space=vmem, size = 0x2000, scoped, tag = 'output window, operand 1, single buffered']
    #allocation15 [shape = 's32[1]{0}', space=sflag, size = 0x4, scoped, tag = 'scoped memory for tpu_custom_call.1']
    %16 = vsyncpa [#allocation3], 0
    %17 = vsyncpa [#allocation6], 0
    %18 = vsyncpa [#allocation9], 0
    %19 = vsyncpa [#allocation12], 0
    %20 = vsyncpa [#allocation4], 0
    %21 = vsyncpa [#allocation15], 0
    // Predicated region
    $region2: #{tpu_custom_call.1} parent=1 // pred_check
      _
    $region3: #{tpu_custom_call.1} parent=1 // pred_check_branch
      %23 = sbr.rel (0) target = $region5
    $region4: #{tpu_custom_call.1} parent=1 // pred_region
      %s25 = ssub.s32 256, 256
      %26 = vsyncadd [#allocation3], %s25
      %s27 = sshll.u32 [#allocation2], 4
      %s28 = int_to_ptr.vmem [resolvable:$true] %s27
      %33 = dma.hbm_to_vmem [thread:$0]  %s0, 256, %s28, [#allocation3], 128, 128, 8
    $region5: #{tpu_custom_call.1} parent=1 // pred_fallthru
      _
    // Predicated region
    $region6: #{tpu_custom_call.1} parent=1 // pred_check
      _
    $region7: #{tpu_custom_call.1} parent=1 // pred_check_branch
      %35 = sbr.rel (0) target = $region9
    $region8: #{tpu_custom_call.1} parent=1 // pred_region
      %s37 = ssub.s32 256, 256
      %38 = vsyncadd [#allocation6], %s37
      %s39 = sshll.u32 [#allocation5], 4
      %s40 = int_to_ptr.vmem [resolvable:$true] %s39
      %45 = dma.hbm_to_vmem [thread:$0]  %s1, 256, %s40, [#allocation6], 128, 128, 8
    $region9: #{tpu_custom_call.1} parent=1 // pred_fallthru
      _
    // Predicated region
    $region10: #{tpu_custom_call.1} parent=1 // pred_check
      _
    $region11: #{tpu_custom_call.1} parent=1 // pred_check_branch
      %47 = sbr.rel (0) target = $region13
    $region12: #{tpu_custom_call.1} parent=1 // pred_region
      %s49 = ssub.s32 256, 256
      %50 = vsyncadd [#allocation6], %s49
      %s51 = sshll.u32 [#allocation7], 4
      %s52 = int_to_ptr.vmem [resolvable:$true] %s51
      %57 = dma.hbm_to_vmem [thread:$0]  %s2, 256, %s52, [#allocation6], 128, 128, 8
    $region13: #{tpu_custom_call.1} parent=1 // pred_fallthru
      _
    // Predicated region
    $region14: #{tpu_custom_call.1} parent=1 // pred_check
      _
    $region15: #{tpu_custom_call.1} parent=1 // pred_check_branch
      %59 = sbr.rel (0) target = $region17
    $region16: #{tpu_custom_call.1} parent=1 // pred_region
      %s61 = ssub.s32 512, 512
      %62 = vsyncadd [#allocation9], %s61
      %s63 = sshll.u32 [#allocation8], 4
      %s64 = int_to_ptr.vmem [resolvable:$true] %s63
      %69 = dma.hbm_to_vmem [thread:$0]  %s3, 512, %s64, [#allocation9], 128, 128, 8
    $region17: #{tpu_custom_call.1} parent=1 // pred_fallthru
      _
    // Predicated region
    $region18: #{tpu_custom_call.1} parent=1 // pred_check
      _
    $region19: #{tpu_custom_call.1} parent=1 // pred_check_branch
      %71 = sbr.rel (0) target = $region21
    $region20: #{tpu_custom_call.1} parent=1 // pred_region
      _
    $region21: #{tpu_custom_call.1} parent=1 // pred_fallthru
      _
    // Predicated region
    $region22: #{tpu_custom_call.1} parent=1 // pred_check
      _
    $region23: #{tpu_custom_call.1} parent=1 // pred_check_branch
      %73 = sbr.rel (0) target = $region25
    $region24: #{tpu_custom_call.1} parent=1 // pred_region
      %s75 = ssub.s32 512, 512
      %76 = vsyncadd [#allocation9], %s75
      %s77 = sshll.u32 [#allocation10], 4
      %s78 = int_to_ptr.vmem [resolvable:$true] %s77
      %83 = dma.hbm_to_vmem [thread:$0]  %s5, 512, %s78, [#allocation9], 128, 128, 8
    $region25: #{tpu_custom_call.1} parent=1 // pred_fallthru
      _
    // Predicated region
    $region26: #{tpu_custom_call.1} parent=1 // pred_check
      _
    $region27: #{tpu_custom_call.1} parent=1 // pred_check_branch
      %85 = sbr.rel (0) target = $region29
    $region28: #{tpu_custom_call.1} parent=1 // pred_region
      _
    $region29: #{tpu_custom_call.1} parent=1 // pred_fallthru
      _
    // Predicated region
    $region30: #{tpu_custom_call.1} parent=1 // pred_check
      _
    $region31: #{tpu_custom_call.1} parent=1 // pred_check_branch
      %87 = sbr.rel (0) target = $region33
    $region32: #{tpu_custom_call.1} parent=1 // pred_region
      %s89 = ssub.s32 512, 512
      %90 = vsyncadd [#allocation12], %s89
      %s91 = sshll.u32 [#allocation11], 4
      %s92 = int_to_ptr.vmem [resolvable:$true] %s91
      %97 = dma.hbm_to_vmem [thread:$0]  %s7, 512, %s92, [#allocation12], 128, 128, 8
    $region33: #{tpu_custom_call.1} parent=1 // pred_fallthru
      _
    // Predicated region
    $region34: #{tpu_custom_call.1} parent=1 // pred_check
      _
    $region35: #{tpu_custom_call.1} parent=1 // pred_check_branch
      %99 = sbr.rel (0) target = $region37
    $region36: #{tpu_custom_call.1} parent=1 // pred_region
      _
    $region37: #{tpu_custom_call.1} parent=1 // pred_fallthru
      _
    // Predicated region
    $region38: #{tpu_custom_call.1} parent=1 // pred_check
      _
    $region39: #{tpu_custom_call.1} parent=1 // pred_check_branch
      %101 = sbr.rel (0) target = $region41
    $region40: #{tpu_custom_call.1} parent=1 // pred_region
      %102 = dma.done [#allocation3], 256
    $region41: #{tpu_custom_call.1} parent=1 // pred_fallthru
      _
    // Predicated region
    $region42: #{tpu_custom_call.1} parent=1 // pred_check
      _
    $region43: #{tpu_custom_call.1} parent=1 // pred_check_branch
      %104 = sbr.rel (0) target = $region45
    $region44: #{tpu_custom_call.1} parent=1 // pred_region
      %105 = dma.done [#allocation6], 256
    $region45: #{tpu_custom_call.1} parent=1 // pred_fallthru
      _
    // Predicated region
    $region46: #{tpu_custom_call.1} parent=1 // pred_check
      _
    $region47: #{tpu_custom_call.1} parent=1 // pred_check_branch
      %107 = sbr.rel (0) target = $region49
    $region48: #{tpu_custom_call.1} parent=1 // pred_region
      %108 = dma.done [#allocation6], 256
    $region49: #{tpu_custom_call.1} parent=1 // pred_fallthru
      _
    // Predicated region
    $region50: #{tpu_custom_call.1} parent=1 // pred_check
      _
    $region51: #{tpu_custom_call.1} parent=1 // pred_check_branch
      %110 = sbr.rel (0) target = $region53
    $region52: #{tpu_custom_call.1} parent=1 // pred_region
      %111 = dma.done [#allocation9], 512
    $region53: #{tpu_custom_call.1} parent=1 // pred_fallthru
      _
    // Predicated region
    $region54: #{tpu_custom_call.1} parent=1 // pred_check
      _
    $region55: #{tpu_custom_call.1} parent=1 // pred_check_branch
      %113 = sbr.rel (0) target = $region57
    $region56: #{tpu_custom_call.1} parent=1 // pred_region
      %114 = dma.done [#allocation9], 512
    $region57: #{tpu_custom_call.1} parent=1 // pred_fallthru
      _
    // Predicated region
    $region58: #{tpu_custom_call.1} parent=1 // pred_check
      _
    $region59: #{tpu_custom_call.1} parent=1 // pred_check_branch
      %116 = sbr.rel (0) target = $region61
    $region60: #{tpu_custom_call.1} parent=1 // pred_region
      %117 = dma.done [#allocation12], 512
    $region61: #{tpu_custom_call.1} parent=1 // pred_fallthru
      _
    %v118 = vld [vmem:[#allocation2] sm:$0xff]
    %v119 = vld [vmem:[#allocation2 + $0x8] sm:$0xff]
    %v120 = vld [vmem:[#allocation5] sm:$0xff]
    %v121 = vld [vmem:[#allocation5 + $0x8] sm:$0xff]
    %v122 = vld [vmem:[#allocation7] sm:$0xff]
    %v123 = vld [vmem:[#allocation7 + $0x8] sm:$0xff]
    %v124 = vld [vmem:[#allocation8] sm:$0xff]
    %v125 = vld [vmem:[#allocation8 + $0x8] sm:$0xff]
    %v126 = vld [vmem:[#allocation8 + $0x10] sm:$0xff]
    %v127 = vld [vmem:[#allocation8 + $0x18] sm:$0xff]
    %v128 = vld [vmem:[%s4] sm:$0x1]
    %v130 = vlaneseq
    %v131 = vshrl.u32 %v130, 7
    %v132 = vsub.s32 0, %v131
    %v133 = vrot.slane %v128, %v132
    %vm135 = vcmask 261120
    %v137 = vsel %vm135, %v118, 0
    %v140 = vsel %vm135, %v119, 0
    %142 = vmatprep.subr.mxu0 0.0
    %143 = vmatpush1.msra.mxu0 0.0
    %144 = vmatprep.subr.mxu0 0.0
    %145 = vmatpush1.msra.mxu0 0.0
    %146 = vmatprep.subr.mxu0 0.0
    %147 = vmatpush1.msra.mxu0 0.0
    %148 = vmatprep.subr.mxu0 0.0
    %149 = vmatpush1.msra.mxu0 0.0
    %150 = vmatprep.subr.mxu0 0.0
    %151 = vmatpush1.msra.mxu0 0.0
    %152 = vmatprep.subr.mxu0 0.0
    %153 = vmatpush1.msra.mxu0 0.0
    %154 = vmatprep.subr.mxu0 0.0
    %155 = vmatpush1.msra.mxu0 0.0
    %156 = vmatprep.subr.mxu0 0.0
    %157 = vmatpush1.msra.mxu0 0.0
    %158 = vmatprep.subr.mxu0 0.0
    %159 = vmatpush1.msra.mxu0 0.0
    %160 = vmatprep.subr.mxu0 0.0
    %161 = vmatpush1.msra.mxu0 0.0
    %162 = vmatprep.subr.mxu0 0.0
    %163 = vmatpush1.msra.mxu0 0.0
    %164 = vmatprep.subr.mxu0 0.0
    %165 = vmatpush1.msra.mxu0 0.0
    %166 = vmatprep.subr.mxu0 0.0
    %167 = vmatpush1.msra.mxu0 %v127
    %168 = vmatprep.subr.mxu0 0.0
    %169 = vmatpush1.msra.mxu0 %v126
    %170 = vmatprep.subr.mxu0 0.0
    %171 = vmatpush1.msra.mxu0 %v125
    %172 = vmatprep.subr.mxu0 0.0
    %173 = vmatpush1.msra.mxu0 %v124
    %174 = vmatprep.subr.mxu0 0.0
    %175 = vmatpush2.msra.mxu0 0.0
    %176 = vmatprep.subr.mxu0 0.0
    %177 = vmatpush2.msra.mxu0 0.0
    %178 = vmatprep.subr.mxu0 0.0
    %179 = vmatpush2.msra.mxu0 0.0
    %180 = vmatprep.subr.mxu0 0.0
    %181 = vmatpush2.msra.mxu0 0.0
    %182 = vmatprep.subr.mxu0 0.0
    %183 = vmatpush2.msra.mxu0 0.0
    %184 = vmatprep.subr.mxu0 0.0
    %185 = vmatpush2.msra.mxu0 0.0
    %186 = vmatprep.subr.mxu0 0.0
    %187 = vmatpush2.msra.mxu0 0.0
    %188 = vmatprep.subr.mxu0 0.0
    %189 = vmatpush2.msra.mxu0 0.0
    %190 = vmatprep.subr.mxu0 0.0
    %191 = vmatpush2.msra.mxu0 0.0
    %192 = vmatprep.subr.mxu0 0.0
    %193 = vmatpush2.msra.mxu0 0.0
    %194 = vmatprep.subr.mxu0 0.0
    %195 = vmatpush2.msra.mxu0 0.0
    %196 = vmatprep.subr.mxu0 0.0
    %197 = vmatpush2.msra.mxu0 0.0
    %198 = vmatprep.subr.mxu0 0.0
    %199 = vmatpush2.msra.mxu0 0.0
    %200 = vmatprep.subr.mxu0 0.0
    %201 = vmatpush2.msra.mxu0 0.0
    %202 = vmatprep.subr.mxu0 0.0
    %203 = vmatpush2.msra.mxu0 0.0
    %204 = vmatprep.subr.mxu0 0.0
    %205 = vmatpush2.msra.mxu0 0.0
    %206 = vmatprep.mubr.f32.mxu0 0.0
    %207 = vmatmul.mubr.f32.gmra.mxu0 %v137
    %v208 = vpop.f32.mrf.mxu0
    %v209 = vadd.f32 %v133, %v208
    %v210 = vpop.f32.mrf.mxu0
    %211 = vmatprep.mubr.f32.mxu0 0.0
    %212 = vmatmul.mubr.f32.gmra.mxu0 %v140
    %v213 = vpop.f32.mrf.mxu0
    %v214 = vadd.f32 %v133, %v213
    %v215 = vpop.f32.mrf.mxu0
    %216 = vdwg.mxu0
    %v217 = vmul.f32 %v209, 0.17677669
    %v218 = vmul.f32 %v214, 0.17677669
    %v219 = vld [vmem:[#allocation10] sm:$0xff]
    %v220 = vld [vmem:[#allocation10 + $0x8] sm:$0xff]
    %v221 = vld [vmem:[#allocation10 + $0x10] sm:$0xff]
    %v222 = vld [vmem:[#allocation10 + $0x18] sm:$0xff]
    %v223 = vld [vmem:[%s6] sm:$0x1]
    %v225 = vlaneseq
    %v226 = vshrl.u32 %v225, 7
    %v227 = vsub.s32 0, %v226
    %v228 = vrot.slane %v223, %v227
    %v231 = vsel %vm135, %v120, 0
    %v234 = vsel %vm135, %v121, 0
    %236 = vmatprep.subr.mxu0 0.0
    %237 = vmatpush1.msra.mxu0 0.0
    %238 = vmatprep.subr.mxu0 0.0
    %239 = vmatpush1.msra.mxu0 0.0
    %240 = vmatprep.subr.mxu0 0.0
    %241 = vmatpush1.msra.mxu0 0.0
    %242 = vmatprep.subr.mxu0 0.0
    %243 = vmatpush1.msra.mxu0 0.0
    %244 = vmatprep.subr.mxu0 0.0
    %245 = vmatpush1.msra.mxu0 0.0
    %246 = vmatprep.subr.mxu0 0.0
    %247 = vmatpush1.msra.mxu0 0.0
    %248 = vmatprep.subr.mxu0 0.0
    %249 = vmatpush1.msra.mxu0 0.0
    %250 = vmatprep.subr.mxu0 0.0
    %251 = vmatpush1.msra.mxu0 0.0
    %252 = vmatprep.subr.mxu0 0.0
    %253 = vmatpush1.msra.mxu0 0.0
    %254 = vmatprep.subr.mxu0 0.0
    %255 = vmatpush1.msra.mxu0 0.0
    %256 = vmatprep.subr.mxu0 0.0
    %257 = vmatpush1.msra.mxu0 0.0
    %258 = vmatprep.subr.mxu0 0.0
    %259 = vmatpush1.msra.mxu0 0.0
    %260 = vmatprep.subr.mxu0 0.0
    %261 = vmatpush1.msra.mxu0 %v222
    %262 = vmatprep.subr.mxu0 0.0
    %263 = vmatpush1.msra.mxu0 %v221
    %264 = vmatprep.subr.mxu0 0.0
    %265 = vmatpush1.msra.mxu0 %v220
    %266 = vmatprep.subr.mxu0 0.0
    %267 = vmatpush1.msra.mxu0 %v219
    %268 = vmatprep.subr.mxu0 0.0
    %269 = vmatpush2.msra.mxu0 0.0
    %270 = vmatprep.subr.mxu0 0.0
    %271 = vmatpush2.msra.mxu0 0.0
    %272 = vmatprep.subr.mxu0 0.0
    %273 = vmatpush2.msra.mxu0 0.0
    %274 = vmatprep.subr.mxu0 0.0
    %275 = vmatpush2.msra.mxu0 0.0
    %276 = vmatprep.subr.mxu0 0.0
    %277 = vmatpush2.msra.mxu0 0.0
    %278 = vmatprep.subr.mxu0 0.0
    %279 = vmatpush2.msra.mxu0 0.0
    %280 = vmatprep.subr.mxu0 0.0
    %281 = vmatpush2.msra.mxu0 0.0
    %282 = vmatprep.subr.mxu0 0.0
    %283 = vmatpush2.msra.mxu0 0.0
    %284 = vmatprep.subr.mxu0 0.0
    %285 = vmatpush2.msra.mxu0 0.0
    %286 = vmatprep.subr.mxu0 0.0
    %287 = vmatpush2.msra.mxu0 0.0
    %288 = vmatprep.subr.mxu0 0.0
    %289 = vmatpush2.msra.mxu0 0.0
    %290 = vmatprep.subr.mxu0 0.0
    %291 = vmatpush2.msra.mxu0 0.0
    %292 = vmatprep.subr.mxu0 0.0
    %293 = vmatpush2.msra.mxu0 0.0
    %294 = vmatprep.subr.mxu0 0.0
    %295 = vmatpush2.msra.mxu0 0.0
    %296 = vmatprep.subr.mxu0 0.0
    %297 = vmatpush2.msra.mxu0 0.0
    %298 = vmatprep.subr.mxu0 0.0
    %299 = vmatpush2.msra.mxu0 0.0
    %300 = vmatprep.mubr.f32.mxu0 0.0
    %301 = vmatmul.mubr.f32.gmra.mxu0 %v231
    %v302 = vpop.f32.mrf.mxu0
    %v303 = vadd.f32 %v228, %v302
    %v304 = vpop.f32.mrf.mxu0
    %305 = vmatprep.mubr.f32.mxu0 0.0
    %306 = vmatmul.mubr.f32.gmra.mxu0 %v234
    %v307 = vpop.f32.mrf.mxu0
    %v308 = vadd.f32 %v228, %v307
    %v309 = vpop.f32.mrf.mxu0
    %310 = vdwg.mxu0
    %v311 = vld [vmem:[#allocation11] sm:$0xff]
    %v312 = vld [vmem:[#allocation11 + $0x8] sm:$0xff]
    %v313 = vld [vmem:[#allocation11 + $0x10] sm:$0xff]
    %v314 = vld [vmem:[#allocation11 + $0x18] sm:$0xff]
    %v315 = vld [vmem:[%s8] sm:$0x1]
    %v317 = vlaneseq
    %v318 = vshrl.u32 %v317, 7
    %v319 = vsub.s32 0, %v318
    %v320 = vrot.slane %v315, %v319
    %v323 = vsel %vm135, %v122, 0
    %v326 = vsel %vm135, %v123, 0
    %328 = vmatprep.subr.mxu0 0.0
    %329 = vmatpush1.msra.mxu0 0.0
    %330 = vmatprep.subr.mxu0 0.0
    %331 = vmatpush1.msra.mxu0 0.0
    %332 = vmatprep.subr.mxu0 0.0
    %333 = vmatpush1.msra.mxu0 0.0
    %334 = vmatprep.subr.mxu0 0.0
    %335 = vmatpush1.msra.mxu0 0.0
    %336 = vmatprep.subr.mxu0 0.0
    %337 = vmatpush1.msra.mxu0 0.0
    %338 = vmatprep.subr.mxu0 0.0
    %339 = vmatpush1.msra.mxu0 0.0
    %340 = vmatprep.subr.mxu0 0.0
    %341 = vmatpush1.msra.mxu0 0.0
    %342 = vmatprep.subr.mxu0 0.0
    %343 = vmatpush1.msra.mxu0 0.0
    %344 = vmatprep.subr.mxu0 0.0
    %345 = vmatpush1.msra.mxu0 0.0
    %346 = vmatprep.subr.mxu0 0.0
    %347 = vmatpush1.msra.mxu0 0.0
    %348 = vmatprep.subr.mxu0 0.0
    %349 = vmatpush1.msra.mxu0 0.0
    %350 = vmatprep.subr.mxu0 0.0
    %351 = vmatpush1.msra.mxu0 0.0
    %352 = vmatprep.subr.mxu0 0.0
    %353 = vmatpush1.msra.mxu0 %v314
    %354 = vmatprep.subr.mxu0 0.0
    %355 = vmatpush1.msra.mxu0 %v313
    %356 = vmatprep.subr.mxu0 0.0
    %357 = vmatpush1.msra.mxu0 %v312
    %358 = vmatprep.subr.mxu0 0.0
    %359 = vmatpush1.msra.mxu0 %v311
    %360 = vmatprep.subr.mxu0 0.0
    %361 = vmatpush2.msra.mxu0 0.0
    %362 = vmatprep.subr.mxu0 0.0
    %363 = vmatpush2.msra.mxu0 0.0
    %364 = vmatprep.subr.mxu0 0.0
    %365 = vmatpush2.msra.mxu0 0.0
    %366 = vmatprep.subr.mxu0 0.0
    %367 = vmatpush2.msra.mxu0 0.0
    %368 = vmatprep.subr.mxu0 0.0
    %369 = vmatpush2.msra.mxu0 0.0
    %370 = vmatprep.subr.mxu0 0.0
    %371 = vmatpush2.msra.mxu0 0.0
    %372 = vmatprep.subr.mxu0 0.0
    %373 = vmatpush2.msra.mxu0 0.0
    %374 = vmatprep.subr.mxu0 0.0
    %375 = vmatpush2.msra.mxu0 0.0
    %376 = vmatprep.subr.mxu0 0.0
    %377 = vmatpush2.msra.mxu0 0.0
    %378 = vmatprep.subr.mxu0 0.0
    %379 = vmatpush2.msra.mxu0 0.0
    %380 = vmatprep.subr.mxu0 0.0
    %381 = vmatpush2.msra.mxu0 0.0
    %382 = vmatprep.subr.mxu0 0.0
    %383 = vmatpush2.msra.mxu0 0.0
    %384 = vmatprep.subr.mxu0 0.0
    %385 = vmatpush2.msra.mxu0 0.0
    %386 = vmatprep.subr.mxu0 0.0
    %387 = vmatpush2.msra.mxu0 0.0
    %388 = vmatprep.subr.mxu0 0.0
    %389 = vmatpush2.msra.mxu0 0.0
    %390 = vmatprep.subr.mxu0 0.0
    %391 = vmatpush2.msra.mxu0 0.0
    %392 = vmatprep.mubr.f32.mxu0 0.0
    %393 = vmatmul.mubr.f32.gmra.mxu0 %v323
    %v394 = vpop.f32.mrf.mxu0
    %v395 = vadd.f32 %v320, %v394
    %v396 = vpop.f32.mrf.mxu0
    %397 = vmatprep.mubr.f32.mxu0 0.0
    %398 = vmatmul.mubr.f32.gmra.mxu0 %v326
    %v399 = vpop.f32.mrf.mxu0
    %v400 = vadd.f32 %v320, %v399
    %v401 = vpop.f32.mrf.mxu0
    %402 = vdwg.mxu0
    %v404 = vsel %vm135, %v217, 0
    %v407 = vsel %vm135, %v303, 0
    %409 = vmatprep.subr.mxu0 0.0
    %410 = vmatpush1.xpose.msra.mxu0 0.0
    %411 = vmatprep.subr.mxu0 0.0
    %412 = vmatpush1.xpose.msra.mxu0 0.0
    %413 = vmatprep.subr.mxu0 0.0
    %414 = vmatpush1.xpose.msra.mxu0 0.0
    %415 = vmatprep.subr.mxu0 0.0
    %416 = vmatpush1.xpose.msra.mxu0 0.0
    %417 = vmatprep.subr.mxu0 0.0
    %418 = vmatpush1.xpose.msra.mxu0 0.0
    %419 = vmatprep.subr.mxu0 0.0
    %420 = vmatpush1.xpose.msra.mxu0 0.0
    %421 = vmatprep.subr.mxu0 0.0
    %422 = vmatpush1.xpose.msra.mxu0 0.0
    %423 = vmatprep.subr.mxu0 0.0
    %424 = vmatpush1.xpose.msra.mxu0 0.0
    %425 = vmatprep.subr.mxu0 0.0
    %426 = vmatpush1.xpose.msra.mxu0 0.0
    %427 = vmatprep.subr.mxu0 0.0
    %428 = vmatpush1.xpose.msra.mxu0 0.0
    %429 = vmatprep.subr.mxu0 0.0
    %430 = vmatpush1.xpose.msra.mxu0 0.0
    %431 = vmatprep.subr.mxu0 0.0
    %432 = vmatpush1.xpose.msra.mxu0 0.0
    %433 = vmatprep.subr.mxu0 0.0
    %434 = vmatpush1.xpose.msra.mxu0 0.0
    %435 = vmatprep.subr.mxu0 0.0
    %436 = vmatpush1.xpose.msra.mxu0 0.0
    %437 = vmatprep.subr.mxu0 0.0
    %438 = vmatpush1.xpose.msra.mxu0 0.0
    %439 = vmatprep.subr.mxu0 0.0
    %440 = vmatpush1.xpose.msra.mxu0 %v407
    %441 = vmatprep.subr.mxu0 0.0
    %442 = vmatpush2.xpose.msra.mxu0 0.0
    %443 = vmatprep.subr.mxu0 0.0
    %444 = vmatpush2.xpose.msra.mxu0 0.0
    %445 = vmatprep.subr.mxu0 0.0
    %446 = vmatpush2.xpose.msra.mxu0 0.0
    %447 = vmatprep.subr.mxu0 0.0
    %448 = vmatpush2.xpose.msra.mxu0 0.0
    %449 = vmatprep.subr.mxu0 0.0
    %450 = vmatpush2.xpose.msra.mxu0 0.0
    %451 = vmatprep.subr.mxu0 0.0
    %452 = vmatpush2.xpose.msra.mxu0 0.0
    %453 = vmatprep.subr.mxu0 0.0
    %454 = vmatpush2.xpose.msra.mxu0 0.0
    %455 = vmatprep.subr.mxu0 0.0
    %456 = vmatpush2.xpose.msra.mxu0 0.0
    %457 = vmatprep.subr.mxu0 0.0
    %458 = vmatpush2.xpose.msra.mxu0 0.0
    %459 = vmatprep.subr.mxu0 0.0
    %460 = vmatpush2.xpose.msra.mxu0 0.0
    %461 = vmatprep.subr.mxu0 0.0
    %462 = vmatpush2.xpose.msra.mxu0 0.0
    %463 = vmatprep.subr.mxu0 0.0
    %464 = vmatpush2.xpose.msra.mxu0 0.0
    %465 = vmatprep.subr.mxu0 0.0
    %466 = vmatpush2.xpose.msra.mxu0 0.0
    %467 = vmatprep.subr.mxu0 0.0
    %468 = vmatpush2.xpose.msra.mxu0 0.0
    %469 = vmatprep.subr.mxu0 0.0
    %470 = vmatpush2.xpose.msra.mxu0 0.0
    %471 = vmatprep.subr.mxu0 0.0
    %472 = vmatpush2.xpose.msra.mxu0 0.0
    %473 = vmatprep.mubr.f32.mxu0 0.0
    %474 = vmatmul.mubr.f32.gmra.mxu0 %v404
    %v475 = vpop.f32.mrf.mxu0
    %v476 = vadd.f32 0.0, %v475
    %v477 = vpop.f32.mrf.mxu0
    %478 = vdwg.mxu0
    %v480 = vsel %vm135, %v218, 0
    %v483 = vsel %vm135, %v308, 0
    %485 = vmatprep.subr.mxu0 0.0
    %486 = vmatpush1.xpose.msra.mxu0 0.0
    %487 = vmatprep.subr.mxu0 0.0
    %488 = vmatpush1.xpose.msra.mxu0 0.0
    %489 = vmatprep.subr.mxu0 0.0
    %490 = vmatpush1.xpose.msra.mxu0 0.0
    %491 = vmatprep.subr.mxu0 0.0
    %492 = vmatpush1.xpose.msra.mxu0 0.0
    %493 = vmatprep.subr.mxu0 0.0
    %494 = vmatpush1.xpose.msra.mxu0 0.0
    %495 = vmatprep.subr.mxu0 0.0
    %496 = vmatpush1.xpose.msra.mxu0 0.0
    %497 = vmatprep.subr.mxu0 0.0
    %498 = vmatpush1.xpose.msra.mxu0 0.0
    %499 = vmatprep.subr.mxu0 0.0
    %500 = vmatpush1.xpose.msra.mxu0 0.0
    %501 = vmatprep.subr.mxu0 0.0
    %502 = vmatpush1.xpose.msra.mxu0 0.0
    %503 = vmatprep.subr.mxu0 0.0
    %504 = vmatpush1.xpose.msra.mxu0 0.0
    %505 = vmatprep.subr.mxu0 0.0
    %506 = vmatpush1.xpose.msra.mxu0 0.0
    %507 = vmatprep.subr.mxu0 0.0
    %508 = vmatpush1.xpose.msra.mxu0 0.0
    %509 = vmatprep.subr.mxu0 0.0
    %510 = vmatpush1.xpose.msra.mxu0 0.0
    %511 = vmatprep.subr.mxu0 0.0
    %512 = vmatpush1.xpose.msra.mxu0 0.0
    %513 = vmatprep.subr.mxu0 0.0
    %514 = vmatpush1.xpose.msra.mxu0 0.0
    %515 = vmatprep.subr.mxu0 0.0
    %516 = vmatpush1.xpose.msra.mxu0 %v483
    %517 = vmatprep.subr.mxu0 0.0
    %518 = vmatpush2.xpose.msra.mxu0 0.0
    %519 = vmatprep.subr.mxu0 0.0
    %520 = vmatpush2.xpose.msra.mxu0 0.0
    %521 = vmatprep.subr.mxu0 0.0
    %522 = vmatpush2.xpose.msra.mxu0 0.0
    %523 = vmatprep.subr.mxu0 0.0
    %524 = vmatpush2.xpose.msra.mxu0 0.0
    %525 = vmatprep.subr.mxu0 0.0
    %526 = vmatpush2.xpose.msra.mxu0 0.0
    %527 = vmatprep.subr.mxu0 0.0
    %528 = vmatpush2.xpose.msra.mxu0 0.0
    %529 = vmatprep.subr.mxu0 0.0
    %530 = vmatpush2.xpose.msra.mxu0 0.0
    %531 = vmatprep.subr.mxu0 0.0
    %532 = vmatpush2.xpose.msra.mxu0 0.0
    %533 = vmatprep.subr.mxu0 0.0
    %534 = vmatpush2.xpose.msra.mxu0 0.0
    %535 = vmatprep.subr.mxu0 0.0
    %536 = vmatpush2.xpose.msra.mxu0 0.0
    %537 = vmatprep.subr.mxu0 0.0
    %538 = vmatpush2.xpose.msra.mxu0 0.0
    %539 = vmatprep.subr.mxu0 0.0
    %540 = vmatpush2.xpose.msra.mxu0 0.0
    %541 = vmatprep.subr.mxu0 0.0
    %542 = vmatpush2.xpose.msra.mxu0 0.0
    %543 = vmatprep.subr.mxu0 0.0
    %544 = vmatpush2.xpose.msra.mxu0 0.0
    %545 = vmatprep.subr.mxu0 0.0
    %546 = vmatpush2.xpose.msra.mxu0 0.0
    %547 = vmatprep.subr.mxu0 0.0
    %548 = vmatpush2.xpose.msra.mxu0 0.0
    %549 = vmatprep.mubr.f32.mxu0 0.0
    %550 = vmatmul.mubr.f32.gmra.mxu0 %v480
    %v551 = vpop.f32.mrf.mxu0
    %v552 = vadd.f32 0.0, %v551
    %v553 = vpop.f32.mrf.mxu0
    %554 = vdwg.mxu0
    %vm555 = vcmask 64512
    %v556 = vsel %vm555, %v476, -inf
    %557 = vmax.xlane.f32.xlu0 %v556
    %v558 = vpop.xlane.xlu0 %557
    %v559 = vsel %vm555, %v552, -inf
    %560 = vmax.xlane.f32.xlu0 %v559
    %v561 = vpop.xlane.xlu0 %560
    %v562 = vsub.f32 %v476, %v558
    %v563 = vsub.f32 %v552, %v561
    %v564 = vmax.f32 %v562, -60.0
    %v565 = vmax.f32 %v563, -60.0
    %v566 = vmul.f32 %v564, 1.442695
    %v567 = vpow.pop %v566
    %v568 = vmul.f32 %v565, 1.442695
    %v569 = vpow.pop %v568
    %v570 = vsel %vm555, %v567, 0.0
    %571 = vadd.xlane.f32.xlu0 %v570
    %v572 = vpop.xlane.xlu0 %571
    %v573 = vsel %vm555, %v569, 0.0
    %574 = vadd.xlane.f32.xlu0 %v573
    %v575 = vpop.xlane.xlu0 %574
    %v576 = vrcp.pop %v572
    %v577 = vmul.f32 %v567, %v576
    %v578 = vrcp.pop %v575
    %v579 = vmul.f32 %v569, %v578
    %v581 = vsel %vm555, %v577, 0
    %583 = vmatprep.subr.mxu0 0.0
    %584 = vmatpush1.msra.mxu0 0.0
    %585 = vmatprep.subr.mxu0 0.0
    %586 = vmatpush1.msra.mxu0 0.0
    %587 = vmatprep.subr.mxu0 0.0
    %588 = vmatpush1.msra.mxu0 0.0
    %589 = vmatprep.subr.mxu0 0.0
    %590 = vmatpush1.msra.mxu0 0.0
    %591 = vmatprep.subr.mxu0 0.0
    %592 = vmatpush1.msra.mxu0 0.0
    %593 = vmatprep.subr.mxu0 0.0
    %594 = vmatpush1.msra.mxu0 0.0
    %595 = vmatprep.subr.mxu0 0.0
    %596 = vmatpush1.msra.mxu0 0.0
    %597 = vmatprep.subr.mxu0 0.0
    %598 = vmatpush1.msra.mxu0 0.0
    %599 = vmatprep.subr.mxu0 0.0
    %600 = vmatpush1.msra.mxu0 0.0
    %601 = vmatprep.subr.mxu0 0.0
    %602 = vmatpush1.msra.mxu0 0.0
    %603 = vmatprep.subr.mxu0 0.0
    %604 = vmatpush1.msra.mxu0 0.0
    %605 = vmatprep.subr.mxu0 0.0
    %606 = vmatpush1.msra.mxu0 0.0
    %607 = vmatprep.subr.mxu0 0.0
    %608 = vmatpush1.msra.mxu0 0.0
    %609 = vmatprep.subr.mxu0 0.0
    %610 = vmatpush1.msra.mxu0 0.0
    %611 = vmatprep.subr.mxu0 0.0
    %612 = vmatpush1.msra.mxu0 0.0
    %613 = vmatprep.subr.mxu0 0.0
    %614 = vmatpush1.msra.mxu0 %v395
    %615 = vmatprep.subr.mxu0 0.0
    %616 = vmatpush2.msra.mxu0 0.0
    %617 = vmatprep.subr.mxu0 0.0
    %618 = vmatpush2.msra.mxu0 0.0
    %619 = vmatprep.subr.mxu0 0.0
    %620 = vmatpush2.msra.mxu0 0.0
    %621 = vmatprep.subr.mxu0 0.0
    %622 = vmatpush2.msra.mxu0 0.0
    %623 = vmatprep.subr.mxu0 0.0
    %624 = vmatpush2.msra.mxu0 0.0
    %625 = vmatprep.subr.mxu0 0.0
    %626 = vmatpush2.msra.mxu0 0.0
    %627 = vmatprep.subr.mxu0 0.0
    %628 = vmatpush2.msra.mxu0 0.0
    %629 = vmatprep.subr.mxu0 0.0
    %630 = vmatpush2.msra.mxu0 0.0
    %631 = vmatprep.subr.mxu0 0.0
    %632 = vmatpush2.msra.mxu0 0.0
    %633 = vmatprep.subr.mxu0 0.0
    %634 = vmatpush2.msra.mxu0 0.0
    %635 = vmatprep.subr.mxu0 0.0
    %636 = vmatpush2.msra.mxu0 0.0
    %637 = vmatprep.subr.mxu0 0.0
    %638 = vmatpush2.msra.mxu0 0.0
    %639 = vmatprep.subr.mxu0 0.0
    %640 = vmatpush2.msra.mxu0 0.0
    %641 = vmatprep.subr.mxu0 0.0
    %642 = vmatpush2.msra.mxu0 0.0
    %643 = vmatprep.subr.mxu0 0.0
    %644 = vmatpush2.msra.mxu0 0.0
    %645 = vmatprep.subr.mxu0 0.0
    %646 = vmatpush2.msra.mxu0 0.0
    %647 = vmatprep.mubr.f32.mxu0 0.0
    %648 = vmatmul.mubr.f32.gmra.mxu0 %v581
    %v649 = vpop.f32.mrf.mxu0
    %v650 = vadd.f32 0.0, %v649
    %v651 = vpop.f32.mrf.mxu0
    %652 = vdwg.mxu0
    %v654 = vsel %vm555, %v579, 0
    %656 = vmatprep.subr.mxu0 0.0
    %657 = vmatpush1.msra.mxu0 0.0
    %658 = vmatprep.subr.mxu0 0.0
    %659 = vmatpush1.msra.mxu0 0.0
    %660 = vmatprep.subr.mxu0 0.0
    %661 = vmatpush1.msra.mxu0 0.0
    %662 = vmatprep.subr.mxu0 0.0
    %663 = vmatpush1.msra.mxu0 0.0
    %664 = vmatprep.subr.mxu0 0.0
    %665 = vmatpush1.msra.mxu0 0.0
    %666 = vmatprep.subr.mxu0 0.0
    %667 = vmatpush1.msra.mxu0 0.0
    %668 = vmatprep.subr.mxu0 0.0
    %669 = vmatpush1.msra.mxu0 0.0
    %670 = vmatprep.subr.mxu0 0.0
    %671 = vmatpush1.msra.mxu0 0.0
    %672 = vmatprep.subr.mxu0 0.0
    %673 = vmatpush1.msra.mxu0 0.0
    %674 = vmatprep.subr.mxu0 0.0
    %675 = vmatpush1.msra.mxu0 0.0
    %676 = vmatprep.subr.mxu0 0.0
    %677 = vmatpush1.msra.mxu0 0.0
    %678 = vmatprep.subr.mxu0 0.0
    %679 = vmatpush1.msra.mxu0 0.0
    %680 = vmatprep.subr.mxu0 0.0
    %681 = vmatpush1.msra.mxu0 0.0
    %682 = vmatprep.subr.mxu0 0.0
    %683 = vmatpush1.msra.mxu0 0.0
    %684 = vmatprep.subr.mxu0 0.0
    %685 = vmatpush1.msra.mxu0 0.0
    %686 = vmatprep.subr.mxu0 0.0
    %687 = vmatpush1.msra.mxu0 %v400
    %688 = vmatprep.subr.mxu0 0.0
    %689 = vmatpush2.msra.mxu0 0.0
    %690 = vmatprep.subr.mxu0 0.0
    %691 = vmatpush2.msra.mxu0 0.0
    %692 = vmatprep.subr.mxu0 0.0
    %693 = vmatpush2.msra.mxu0 0.0
    %694 = vmatprep.subr.mxu0 0.0
    %695 = vmatpush2.msra.mxu0 0.0
    %696 = vmatprep.subr.mxu0 0.0
    %697 = vmatpush2.msra.mxu0 0.0
    %698 = vmatprep.subr.mxu0 0.0
    %699 = vmatpush2.msra.mxu0 0.0
    %700 = vmatprep.subr.mxu0 0.0
    %701 = vmatpush2.msra.mxu0 0.0
    %702 = vmatprep.subr.mxu0 0.0
    %703 = vmatpush2.msra.mxu0 0.0
    %704 = vmatprep.subr.mxu0 0.0
    %705 = vmatpush2.msra.mxu0 0.0
    %706 = vmatprep.subr.mxu0 0.0
    %707 = vmatpush2.msra.mxu0 0.0
    %708 = vmatprep.subr.mxu0 0.0
    %709 = vmatpush2.msra.mxu0 0.0
    %710 = vmatprep.subr.mxu0 0.0
    %711 = vmatpush2.msra.mxu0 0.0
    %712 = vmatprep.subr.mxu0 0.0
    %713 = vmatpush2.msra.mxu0 0.0
    %714 = vmatprep.subr.mxu0 0.0
    %715 = vmatpush2.msra.mxu0 0.0
    %716 = vmatprep.subr.mxu0 0.0
    %717 = vmatpush2.msra.mxu0 0.0
    %718 = vmatprep.subr.mxu0 0.0
    %719 = vmatpush2.msra.mxu0 0.0
    %720 = vmatprep.mubr.f32.mxu0 0.0
    %721 = vmatmul.mubr.f32.gmra.mxu0 %v654
    %v722 = vpop.f32.mrf.mxu0
    %v723 = vadd.f32 0.0, %v722
    %v724 = vpop.f32.mrf.mxu0
    %725 = vdwg.mxu0
    %726 = vst.msk [vmem:[#allocation13] sm:$0xff] %vm135, %v650
    %727 = vst.msk [vmem:[#allocation13 + $0x8] sm:$0xff] %vm135, %v723
    %728 = vst.msk [vmem:[#allocation14] sm:$0xff] %vm555, %v577
    %729 = vst.msk [vmem:[#allocation14 + $0x8] sm:$0xff] %vm555, %v579
    // Predicated region
    $region62: #{tpu_custom_call.1} parent=1 // pred_check
      _
    $region63: #{tpu_custom_call.1} parent=1 // pred_check_branch
      %731 = sbr.rel (0) target = $region65
    $region64: #{tpu_custom_call.1} parent=1 // pred_region
      %s733 = ssub.s32 256, 256
      %734 = vsyncadd [#allocation4], %s733
      %s735 = sshll.u32 [#allocation13], 4
      %s736 = int_to_ptr.vmem [resolvable:$true] %s735
      %741 = dma.vmem_to_hbm [thread:$0]  %s736, 256, %s9, [#allocation4], 128, 128, 8
    $region65: #{tpu_custom_call.1} parent=1 // pred_fallthru
      _
    // Predicated region
    $region66: #{tpu_custom_call.1} parent=1 // pred_check
      _
    $region67: #{tpu_custom_call.1} parent=1 // pred_check_branch
      %743 = sbr.rel (0) target = $region69
    $region68: #{tpu_custom_call.1} parent=1 // pred_region
      %s745 = ssub.s32 256, 256
      %746 = vsyncadd [#allocation15], %s745
      %s747 = sshll.u32 [#allocation14], 4
      %s748 = int_to_ptr.vmem [resolvable:$true] %s747
      %753 = dma.vmem_to_hbm [thread:$0]  %s748, 256, %s10, [#allocation15], 128, 128, 8
    $region69: #{tpu_custom_call.1} parent=1 // pred_fallthru
      _
    // Predicated region
    $region70: #{tpu_custom_call.1} parent=1 // pred_check
      _
    $region71: #{tpu_custom_call.1} parent=1 // pred_check_branch
      %755 = sbr.rel (0) target = $region73
    $region72: #{tpu_custom_call.1} parent=1 // pred_region
      %756 = dma.done [#allocation4], 256
    $region73: #{tpu_custom_call.1} parent=1 // pred_fallthru
      _
    // Predicated region
    $region74: #{tpu_custom_call.1} parent=1 // pred_check
      _
    $region75: #{tpu_custom_call.1} parent=1 // pred_check_branch
      %758 = sbr.rel (0) target = $region77
    $region76: #{tpu_custom_call.1} parent=1 // pred_region
      %759 = dma.done [#allocation15], 256
    $region77: #{tpu_custom_call.1} parent=1 // pred_fallthru
      _
    %760 = vsyncpa [#allocation3], 1
    %761 = vsyncpa [#allocation6], 1
    %762 = vsyncpa [#allocation9], 1
    %763 = vsyncpa [#allocation12], 1
    %764 = vsyncpa [#allocation4], 1
    %765 = vsyncpa [#allocation15], 1

</llo_original>
